<compile_context>
chip_gen: v7x
topology: tpu7x:2x2x1
jax: 0.10.0
libtpu: 0.0.40
codegen_flags: <defaults>
</compile_context>

<pallas_src>
import functools

import jax
import jax.numpy as jnp
from jax.experimental import pallas as pl
from jax.experimental.pallas import tpu as pltpu


def representation_kernel(x_ref, w1_ref, b1_ref, w2_ref, b2_ref, o_ref):
    # First Linear: [tile, Es] @ [Es, Cs] + [1, Cs]  (f32 accumulation on MXU)
    h = jnp.dot(x_ref[...], w1_ref[...], preferred_element_type=jnp.float32)
    h = jnp.tanh(h + b1_ref[...].astype(jnp.float32))     # tanh on f32 (EUP)
    # Second Linear: [tile, Cs] @ [Cs, Hs] + [1, Hs]
    out = jnp.dot(h.astype(w2_ref.dtype), w2_ref[...],
                  preferred_element_type=jnp.float32)
    out = out + b2_ref[...].astype(jnp.float32)
    o_ref[...] = out.astype(o_ref.dtype)                   # cast only on store


def _block_diag(w, rep):
    """[in, out] -> block-diagonal [rep*in, rep*out] with `rep` copies of w."""
    return jnp.kron(jnp.eye(rep, dtype=w.dtype), w)


def representation_forward(x, w1, b1, w2, b2, *, block_rows=1024, out_dtype=None):
    """x: [B, E]; w1: [E, C]; b1: [C] or [1, C]; w2: [C, H]; b2: [H] or [1, H]."""
    B, E = x.shape
    Ew, C = w1.shape
    Cw, H = w2.shape
    assert Ew == E and Cw == C
    b1 = b1.reshape(1, C)
    b2 = b2.reshape(1, H)
    if out_dtype is None:
        out_dtype = x.dtype

    # ---- lane-dense "slab" packing ----------------------------------------
    # E and H are typically << 128 lanes, so [B, E] loads / [B, H] stores
    # would be masked partial-lane vector ops.  Fold `rep` consecutive batch
    # rows into the lane dimension (row-major reshapes in the wrapper, free in
    # XLA) and make the weights block-diagonal: identical math, identical HBM
    # bytes for activations, but the kernel operates on 128-lane-dense tiles.
    rep = 128 // E if (E < 128 and 128 % E == 0) else 1
    Es, Cs, Hs = rep * E, rep * C, rep * H
    if rep > 1:
        w1k = _block_diag(w1, rep)
        w2k = _block_diag(w2, rep)
        b1k = jnp.tile(b1, (1, rep))
        b2k = jnp.tile(b2, (1, rep))
    else:
        w1k, b1k, w2k, b2k = w1, b1, w2, b2

    # ---- batch tiling ------------------------------------------------------
    # Big tiles amortise per-grid-step overhead; keep at least 2 grid steps
    # when there is enough work so both v7x TensorCores get a share.
    bs_raw = pl.cdiv(B, rep)                 # slab rows needed for B batch rows
    if bs_raw < 16:
        tile_s = bs_raw                      # tiny batch: one full-extent tile
        bs = bs_raw
    else:
        n_tiles = max(pl.cdiv(bs_raw, block_rows), 2)
        tile_s = pl.cdiv(pl.cdiv(bs_raw, n_tiles), 8) * 8   # sublane-aligned
        bs = pl.cdiv(bs_raw, tile_s) * tile_s
    bp = bs * rep                            # padded batch rows

    if bp != B:
        x = jnp.pad(x, ((0, bp - B), (0, 0)))
    xs = x.reshape(bs, Es)                   # lane-dense input slab (free)

    grid = (bs // tile_s,)

    # Advisory cost for XLA's scheduler (kernel is HBM/overhead bound).
    cost = pl.CostEstimate(
        flops=2 * B * (E * C + C * H),
        transcendentals=B * C,
        bytes_accessed=B * (E + H) * x.dtype.itemsize
        + (E * C + C + C * H + H) * w1.dtype.itemsize,
    )

    out_slab = pl.pallas_call(
        representation_kernel,
        out_shape=jax.ShapeDtypeStruct((bs, Hs), out_dtype),
        grid=grid,
        in_specs=[
            pl.BlockSpec((tile_s, Es), lambda i: (i, 0)),   # x slab tile
            pl.BlockSpec((Es, Cs), lambda i: (0, 0)),       # W1 (VMEM resident)
            pl.BlockSpec((1, Cs), lambda i: (0, 0)),        # b1
            pl.BlockSpec((Cs, Hs), lambda i: (0, 0)),       # W2 (VMEM resident)
            pl.BlockSpec((1, Hs), lambda i: (0, 0)),        # b2
        ],
        out_specs=pl.BlockSpec((tile_s, Hs), lambda i: (i, 0)),
        compiler_params=pltpu.CompilerParams(
            dimension_semantics=("parallel",)),
        cost_estimate=cost,
    )(xs, w1k, b1k, w2k, b2k)

    # Undo the slab packing (free reshape) and drop batch padding.
    return out_slab.reshape(bp, H)[:B]


def init_params(key, encoding_size, compression_size, hidden_size,
                dtype=jnp.float32):
    """Matches nn.Linear's default U(-1/sqrt(fan_in), 1/sqrt(fan_in)) init."""
    k1, k2, k3, k4 = jax.random.split(key, 4)
    bound1 = 1.0 / (encoding_size ** 0.5)
    bound2 = 1.0 / (compression_size ** 0.5)
    # Stored as [in, out] (transpose of PyTorch's [out, in]).
    w1 = jax.random.uniform(k1, (encoding_size, compression_size),
                            minval=-bound1, maxval=bound1, dtype=dtype)
    b1 = jax.random.uniform(k2, (compression_size,),
                            minval=-bound1, maxval=bound1, dtype=dtype)
    w2 = jax.random.uniform(k3, (compression_size, hidden_size),
                            minval=-bound2, maxval=bound2, dtype=dtype)
    b2 = jax.random.uniform(k4, (hidden_size,),
                            minval=-bound2, maxval=bound2, dtype=dtype)
    return w1, b1, w2, b2


if __name__ == "__main__":
    encoding_size, compression_size, hidden_size = 32, 64, 32

    key = jax.random.PRNGKey(0)
    kx, kp, kx2 = jax.random.split(key, 3)
    w1, b1, w2, b2 = init_params(kp, encoding_size, compression_size, hidden_size)

    fwd = jax.jit(functools.partial(representation_forward, block_rows=1024))

    # --- small f32 check (exact path, tight tolerance) ---------------------
    batch = 8
    x = jax.random.normal(kx, (batch, encoding_size), dtype=jnp.float32)
    out = jax.block_until_ready(fwd(x, w1, b1, w2, b2))
    ref = jnp.tanh(x @ w1 + b1[None, :]) @ w2 + b2[None, :]
    assert out.shape == (batch, hidden_size)
    assert jnp.allclose(out, ref, atol=1e-5, rtol=1e-5)

    # --- larger bf16 run: exercises tiled, padded, lane-dense fast path ----
    batch2 = 1000  # not a multiple of the tile -> exercises batch padding
    x2 = jax.random.normal(kx2, (batch2, encoding_size), dtype=jnp.float32)
    bf = jnp.bfloat16
    x2b, w1b, b1b, w2b, b2b = (a.astype(bf) for a in (x2, w1, b1, w2, b2))
    out2 = jax.block_until_ready(fwd(x2b, w1b, b1b, w2b, b2b))
    ref2 = (jnp.tanh(x2b.astype(jnp.float32) @ w1b.astype(jnp.float32)
                     + b1b.astype(jnp.float32)[None, :])
            @ w2b.astype(jnp.float32) + b2b.astype(jnp.float32)[None, :])
    assert out2.shape == (batch2, hidden_size)
    assert jnp.allclose(out2.astype(jnp.float32), ref2, atol=5e-2, rtol=5e-2)

    print("KERNEL_OK")
</pallas_src>

<mosaic_0001>
module attributes {stable_mosaic.version = 11 : i64} {
  func.func @representation_kernel(%arg0: i32, %arg1: memref<2x128xf32, #tpu.memory_space<vmem>>, %arg2: memref<128x256xf32, #tpu.memory_space<vmem>>, %arg3: memref<1x256xf32, #tpu.memory_space<vmem>>, %arg4: memref<256x128xf32, #tpu.memory_space<vmem>>, %arg5: memref<1x128xf32, #tpu.memory_space<vmem>>, %arg6: memref<2x128xf32, #tpu.memory_space<vmem>>) attributes {dimension_semantics = [#tpu.dimension_semantics<parallel>], iteration_bounds = array<i64: 1>, scalar_prefetch = 0 : i64, scratch_operands = 0 : i64, tpu.core_type = #tpu.core_type<tc>, window_params = [{transform_indices = @transform_0, window_bounds = array<i64: 2, 128>}, {pipeline_mode = #tpu.pipeline_mode<synchronous>, transform_indices = @transform_1, window_bounds = array<i64: 128, 256>}, {pipeline_mode = #tpu.pipeline_mode<synchronous>, transform_indices = @transform_2, window_bounds = array<i64: 1, 256>}, {pipeline_mode = #tpu.pipeline_mode<synchronous>, transform_indices = @transform_3, window_bounds = array<i64: 256, 128>}, {pipeline_mode = #tpu.pipeline_mode<synchronous>, transform_indices = @transform_4, window_bounds = array<i64: 1, 128>}, {transform_indices = @transform_5, window_bounds = array<i64: 2, 128>}]} {
    %c0 = arith.constant 0 : index
    %c0_0 = arith.constant 0 : index
    %0 = vector.load %arg1[%c0, %c0_0] : memref<2x128xf32, #tpu.memory_space<vmem>>, vector<2x128xf32>
    %c0_1 = arith.constant 0 : index
    %c0_2 = arith.constant 0 : index
    %1 = vector.load %arg2[%c0_1, %c0_2] : memref<128x256xf32, #tpu.memory_space<vmem>>, vector<128x256xf32>
    %cst = arith.constant dense<0.000000e+00> : vector<2x256xf32>
    %2 = tpu.matmul %0, %1, %cst {dimension_numbers = #tpu.dot_dimension_numbers<[1], [0], [0], [1], [0, 0, 1, 1], [], []>} : vector<2x128xf32>, vector<128x256xf32>, vector<2x256xf32> -> vector<2x256xf32>
    %c0_3 = arith.constant 0 : index
    %c0_4 = arith.constant 0 : index
    %3 = vector.load %arg3[%c0_3, %c0_4] : memref<1x256xf32, #tpu.memory_space<vmem>>, vector<1x256xf32>
    %4 = vector.broadcast %3 : vector<1x256xf32> to vector<2x256xf32>
    %5 = arith.addf %2, %4 : vector<2x256xf32>
    %6 = math.tanh %5 : vector<2x256xf32>
    %c0_5 = arith.constant 0 : index
    %c0_6 = arith.constant 0 : index
    %7 = vector.load %arg4[%c0_5, %c0_6] : memref<256x128xf32, #tpu.memory_space<vmem>>, vector<256x128xf32>
    %cst_7 = arith.constant dense<0.000000e+00> : vector<2x128xf32>
    %8 = tpu.matmul %6, %7, %cst_7 {dimension_numbers = #tpu.dot_dimension_numbers<[1], [0], [0], [1], [0, 0, 1, 1], [], []>} : vector<2x256xf32>, vector<256x128xf32>, vector<2x128xf32> -> vector<2x128xf32>
    %c0_8 = arith.constant 0 : index
    %c0_9 = arith.constant 0 : index
    %9 = vector.load %arg5[%c0_8, %c0_9] : memref<1x128xf32, #tpu.memory_space<vmem>>, vector<1x128xf32>
    %10 = vector.broadcast %9 : vector<1x128xf32> to vector<2x128xf32>
    %11 = arith.addf %8, %10 : vector<2x128xf32>
    %c0_10 = arith.constant 0 : index
    %c0_11 = arith.constant 0 : index
    %12 = vector.load %arg6[%c0_10, %c0_11] : memref<2x128xf32, #tpu.memory_space<vmem>>, vector<2x128xf32>
    tpu.vector_store %arg6[%c0_10, %c0_11], %11 {strides = array<i32>} : memref<2x128xf32, #tpu.memory_space<vmem>>, vector<2x128xf32>,
    return
  }
  func.func @transform_0(%arg0: i32) -> (i32, i32) {
    %c0_i32 = arith.constant 0 : i32
    %c0_i32_0 = arith.constant 0 : i32
    return %arg0, %c0_i32 : i32, i32
  }
  func.func @transform_1(%arg0: i32) -> (i32, i32) {
    %c0_i32 = arith.constant 0 : i32
    %c0_i32_0 = arith.constant 0 : i32
    %c0_i32_1 = arith.constant 0 : i32
    return %c0_i32, %c0_i32_0 : i32, i32
  }
  func.func @transform_2(%arg0: i32) -> (i32, i32) {
    %c0_i32 = arith.constant 0 : i32
    %c0_i32_0 = arith.constant 0 : i32
    %c0_i32_1 = arith.constant 0 : i32
    return %c0_i32, %c0_i32_0 : i32, i32
  }
  func.func @transform_3(%arg0: i32) -> (i32, i32) {
    %c0_i32 = arith.constant 0 : i32
    %c0_i32_0 = arith.constant 0 : i32
    %c0_i32_1 = arith.constant 0 : i32
    return %c0_i32, %c0_i32_0 : i32, i32
  }
  func.func @transform_4(%arg0: i32) -> (i32, i32) {
    %c0_i32 = arith.constant 0 : i32
    %c0_i32_0 = arith.constant 0 : i32
    %c0_i32_1 = arith.constant 0 : i32
    return %c0_i32, %c0_i32_0 : i32, i32
  }
  func.func @transform_5(%arg0: i32) -> (i32, i32) {
    %c0_i32 = arith.constant 0 : i32
    %c0_i32_0 = arith.constant 0 : i32
    return %arg0, %c0_i32 : i32, i32
  }
}

</mosaic_0001>

<llo_original>
// kernel: representation_forward.1
$region0: #{representation_forward.1}
  #allocation0 [shape = 'u32[]', space=smem, size = 0x4, offset = 0x4, fixed_abs, tag = 'smem constant byte address 0x4 - core index']
  #allocation1 [shape = 'u32[144,128]{1,0:T(1,128)}', space=vmem, size = 0x12000, scoped, tag = 'internal scratch']
  %s0 = inlined_call_operand.vmem [shape: f32[2,128], index: 0, kind: input, shape index: {}]
  %s1 = inlined_call_operand.vmem [shape: f32[128,256], index: 1, kind: input, shape index: {}]
  %s2 = inlined_call_operand.vmem [shape: f32[1,256], index: 2, kind: input, shape index: {}]
  %s3 = inlined_call_operand.vmem [shape: f32[256,128], index: 3, kind: input, shape index: {}]
  %s4 = inlined_call_operand.vmem [shape: f32[1,128], index: 4, kind: input, shape index: {}]
  %s5 = inlined_call_operand.vmem [shape: f32[2,128], index: 5, kind: output, shape index: {}]
  %s6 = sld [smem:[#allocation0]]
  $region30: #{representation_forward.1} parent=0
    _
  %s8 = ssub.s32 1, %s6
  %s9 = scalar_select 0, %s8, %s6
  // Predicated region
  $region2: #{representation_forward.1} parent=0 // pred_check
    _
  $region3: #{representation_forward.1} parent=0 // pred_check_branch
    %11 = sbr.rel (0) target = $region5
  $region4: #{representation_forward.1} parent=0 // pred_region
    _
  $region5: #{representation_forward.1} parent=0 // pred_fallthru
    _
  // Predicated region
  $region6: #{representation_forward.1} parent=0 // pred_check
    _
  $region7: #{representation_forward.1} parent=0 // pred_check_branch
    %13 = sbr.rel (0) target = $region9
  $region8: #{representation_forward.1} parent=0 // pred_region
    _
  $region9: #{representation_forward.1} parent=0 // pred_fallthru
    _
  // Predicated region
  $region10: #{representation_forward.1} parent=0 // pred_check
    _
  $region11: #{representation_forward.1} parent=0 // pred_check_branch
    %15 = sbr.rel (0) target = $region13
  $region12: #{representation_forward.1} parent=0 // pred_region
    _
  $region13: #{representation_forward.1} parent=0 // pred_fallthru
    _
  // Predicated region
  $region14: #{representation_forward.1} parent=0 // pred_check
    _
  $region15: #{representation_forward.1} parent=0 // pred_check_branch
    %17 = sbr.rel (0) target = $region17
  $region16: #{representation_forward.1} parent=0 // pred_region
    _
  $region17: #{representation_forward.1} parent=0 // pred_fallthru
    _
  // Predicated region
  $region18: #{representation_forward.1} parent=0 // pred_check
    _
  $region19: #{representation_forward.1} parent=0 // pred_check_branch
    %19 = sbr.rel (0) target = $region21
  $region20: #{representation_forward.1} parent=0 // pred_region
    _
  $region21: #{representation_forward.1} parent=0 // pred_fallthru
    _
  %v20 = vld [vmem:[%s0] sm:$0x3]
  %v21 = vld [vmem:[%s1] sm:$0xff]
  %v22 = vld [vmem:[%s1 + $0x8] sm:$0xff]
  %v23 = vld [vmem:[%s1 + $0x10] sm:$0xff]
  %v24 = vld [vmem:[%s1 + $0x18] sm:$0xff]
  %v25 = vld [vmem:[%s1 + $0x20] sm:$0xff]
  %v26 = vld [vmem:[%s1 + $0x28] sm:$0xff]
  %v27 = vld [vmem:[%s1 + $0x30] sm:$0xff]
  %v28 = vld [vmem:[%s1 + $0x38] sm:$0xff]
  %v29 = vld [vmem:[%s1 + $0x40] sm:$0xff]
  %v30 = vld [vmem:[%s1 + $0x48] sm:$0xff]
  %v31 = vld [vmem:[%s1 + $0x50] sm:$0xff]
  %v32 = vld [vmem:[%s1 + $0x58] sm:$0xff]
  %v33 = vld [vmem:[%s1 + $0x60] sm:$0xff]
  %v34 = vld [vmem:[%s1 + $0x68] sm:$0xff]
  %v35 = vld [vmem:[%s1 + $0x70] sm:$0xff]
  %v36 = vld [vmem:[%s1 + $0x78] sm:$0xff]
  %v37 = vld [vmem:[%s1 + $0x80] sm:$0xff]
  %v38 = vld [vmem:[%s1 + $0x88] sm:$0xff]
  %v39 = vld [vmem:[%s1 + $0x90] sm:$0xff]
  %v40 = vld [vmem:[%s1 + $0x98] sm:$0xff]
  %v41 = vld [vmem:[%s1 + $0xa0] sm:$0xff]
  %v42 = vld [vmem:[%s1 + $0xa8] sm:$0xff]
  %v43 = vld [vmem:[%s1 + $0xb0] sm:$0xff]
  %v44 = vld [vmem:[%s1 + $0xb8] sm:$0xff]
  %v45 = vld [vmem:[%s1 + $0xc0] sm:$0xff]
  %v46 = vld [vmem:[%s1 + $0xc8] sm:$0xff]
  %v47 = vld [vmem:[%s1 + $0xd0] sm:$0xff]
  %v48 = vld [vmem:[%s1 + $0xd8] sm:$0xff]
  %v49 = vld [vmem:[%s1 + $0xe0] sm:$0xff]
  %v50 = vld [vmem:[%s1 + $0xe8] sm:$0xff]
  %v51 = vld [vmem:[%s1 + $0xf0] sm:$0xff]
  %v52 = vld [vmem:[%s1 + $0xf8] sm:$0xff]
  %v53 = vld [vmem:[%s2] sm:$0x3]
  %v55 = vlaneseq
  %v56 = vshrl.u32 %v55, 7
  %v57 = vsub.s32 0, %v56
  %v58 = vrot.slane %v53, %v57
  %v59 = vlaneseq
  %v60 = vshrl.u32 %v59, 7
  %v61 = vsub.s32 1, %v60
  %v62 = vrot.slane %v53, %v61
  %65 = vmatprep.subr.mxu0 %v22
  %66 = vmatpush1.msra.mxu0 %v21
  %67 = vmatprep.subr.mxu0 %v24
  %68 = vmatpush1.msra.mxu0 %v23
  %69 = vmatprep.subr.mxu0 %v26
  %70 = vmatpush1.msra.mxu0 %v25
  %71 = vmatprep.subr.mxu0 %v28
  %72 = vmatpush1.msra.mxu0 %v27
  %73 = vmatprep.subr.mxu0 %v30
  %74 = vmatpush1.msra.mxu0 %v29
  %75 = vmatprep.subr.mxu0 %v32
  %76 = vmatpush1.msra.mxu0 %v31
  %77 = vmatprep.subr.mxu0 %v34
  %78 = vmatpush1.msra.mxu0 %v33
  %79 = vmatprep.subr.mxu0 %v36
  %80 = vmatpush1.msra.mxu0 %v35
  %81 = vmatprep.subr.mxu0 %v38
  %82 = vmatpush1.msra.mxu0 %v37
  %83 = vmatprep.subr.mxu0 %v40
  %84 = vmatpush1.msra.mxu0 %v39
  %85 = vmatprep.subr.mxu0 %v42
  %86 = vmatpush1.msra.mxu0 %v41
  %87 = vmatprep.subr.mxu0 %v44
  %88 = vmatpush1.msra.mxu0 %v43
  %89 = vmatprep.subr.mxu0 %v46
  %90 = vmatpush1.msra.mxu0 %v45
  %91 = vmatprep.subr.mxu0 %v48
  %92 = vmatpush1.msra.mxu0 %v47
  %93 = vmatprep.subr.mxu0 %v50
  %94 = vmatpush1.msra.mxu0 %v49
  %95 = vmatprep.subr.mxu0 %v52
  %96 = vmatpush1.msra.mxu0 %v51
  %97 = vmatprep.subr.mxu0 0.0
  %98 = vmatpush1.msra.mxu0 0.0
  %99 = vmatprep.subr.mxu0 0.0
  %100 = vmatpush1.msra.mxu0 0.0
  %101 = vmatprep.subr.mxu0 0.0
  %102 = vmatpush1.msra.mxu0 0.0
  %103 = vmatprep.subr.mxu0 0.0
  %104 = vmatpush1.msra.mxu0 0.0
  %105 = vmatprep.subr.mxu0 0.0
  %106 = vmatpush1.msra.mxu0 0.0
  %107 = vmatprep.subr.mxu0 0.0
  %108 = vmatpush1.msra.mxu0 0.0
  %109 = vmatprep.subr.mxu0 0.0
  %110 = vmatpush1.msra.mxu0 0.0
  %111 = vmatprep.subr.mxu0 0.0
  %112 = vmatpush1.msra.mxu0 0.0
  %113 = vmatprep.subr.mxu0 0.0
  %114 = vmatpush1.msra.mxu0 0.0
  %115 = vmatprep.subr.mxu0 0.0
  %116 = vmatpush1.msra.mxu0 0.0
  %117 = vmatprep.subr.mxu0 0.0
  %118 = vmatpush1.msra.mxu0 0.0
  %119 = vmatprep.subr.mxu0 0.0
  %120 = vmatpush1.msra.mxu0 0.0
  %121 = vmatprep.subr.mxu0 0.0
  %122 = vmatpush1.msra.mxu0 0.0
  %123 = vmatprep.subr.mxu0 0.0
  %124 = vmatpush1.msra.mxu0 0.0
  %125 = vmatprep.subr.mxu0 0.0
  %126 = vmatpush1.msra.mxu0 0.0
  %127 = vmatprep.subr.mxu0 0.0
  %128 = vmatpush1.msra.mxu0 0.0
  %129 = vmatprep.mubr.f32.mxu0 0.0
  %130 = vmatmul.mubr.f32.gmra.mrb[0].mxu0 %v20
  %v131 = vpop.f32.mrb[0].mxu0
  %v132 = vadd.f32 %v58, %v131
  %v133 = vpop.f32.mrb[0].mxu0
  %v134 = vadd.f32 %v62, %v133
  %135 = vdwg.mxu0
  %v136 = vtanh.pop %v132
  %v137 = vtanh.pop %v134
  %v138 = vld [vmem:[%s3] sm:$0xff]
  %v139 = vld [vmem:[%s3 + $0x8] sm:$0xff]
  %v140 = vld [vmem:[%s3 + $0x10] sm:$0xff]
  %v141 = vld [vmem:[%s3 + $0x18] sm:$0xff]
  %v142 = vld [vmem:[%s3 + $0x20] sm:$0xff]
  %v143 = vld [vmem:[%s3 + $0x28] sm:$0xff]
  %v144 = vld [vmem:[%s3 + $0x30] sm:$0xff]
  %v145 = vld [vmem:[%s3 + $0x38] sm:$0xff]
  %v146 = vld [vmem:[%s3 + $0x40] sm:$0xff]
  %v147 = vld [vmem:[%s3 + $0x48] sm:$0xff]
  %v148 = vld [vmem:[%s3 + $0x50] sm:$0xff]
  %v149 = vld [vmem:[%s3 + $0x58] sm:$0xff]
  %v150 = vld [vmem:[%s3 + $0x60] sm:$0xff]
  %v151 = vld [vmem:[%s3 + $0x68] sm:$0xff]
  %v152 = vld [vmem:[%s3 + $0x70] sm:$0xff]
  %v153 = vld [vmem:[%s3 + $0x78] sm:$0xff]
  %v154 = vld [vmem:[%s3 + $0x80] sm:$0xff]
  %v155 = vld [vmem:[%s3 + $0x88] sm:$0xff]
  %v156 = vld [vmem:[%s3 + $0x90] sm:$0xff]
  %v157 = vld [vmem:[%s3 + $0x98] sm:$0xff]
  %v158 = vld [vmem:[%s3 + $0xa0] sm:$0xff]
  %v159 = vld [vmem:[%s3 + $0xa8] sm:$0xff]
  %v160 = vld [vmem:[%s3 + $0xb0] sm:$0xff]
  %v161 = vld [vmem:[%s3 + $0xb8] sm:$0xff]
  %v162 = vld [vmem:[%s3 + $0xc0] sm:$0xff]
  %v163 = vld [vmem:[%s3 + $0xc8] sm:$0xff]
  %v164 = vld [vmem:[%s3 + $0xd0] sm:$0xff]
  %v165 = vld [vmem:[%s3 + $0xd8] sm:$0xff]
  %v166 = vld [vmem:[%s3 + $0xe0] sm:$0xff]
  %v167 = vld [vmem:[%s3 + $0xe8] sm:$0xff]
  %v168 = vld [vmem:[%s3 + $0xf0] sm:$0xff]
  %v169 = vld [vmem:[%s3 + $0xf8] sm:$0xff]
  %v170 = vld [vmem:[%s4] sm:$0x1]
  %v172 = vlaneseq
  %v173 = vshrl.u32 %v172, 7
  %v174 = vsub.s32 0, %v173
  %v175 = vrot.slane %v170, %v174
  %177 = vmatprep.subr.mxu0 0.0
  %178 = vmatpush1.msra.mxu0 %v138
  %179 = vmatprep.subr.mxu0 0.0
  %180 = vmatpush1.msra.mxu0 %v139
  %181 = vmatprep.subr.mxu0 0.0
  %182 = vmatpush1.msra.mxu0 %v140
  %183 = vmatprep.subr.mxu0 0.0
  %184 = vmatpush1.msra.mxu0 %v141
  %185 = vmatprep.subr.mxu0 0.0
  %186 = vmatpush1.msra.mxu0 %v142
  %187 = vmatprep.subr.mxu0 0.0
  %188 = vmatpush1.msra.mxu0 %v143
  %189 = vmatprep.subr.mxu0 0.0
  %190 = vmatpush1.msra.mxu0 %v144
  %191 = vmatprep.subr.mxu0 0.0
  %192 = vmatpush1.msra.mxu0 %v145
  %193 = vmatprep.subr.mxu0 0.0
  %194 = vmatpush1.msra.mxu0 %v146
  %195 = vmatprep.subr.mxu0 0.0
  %196 = vmatpush1.msra.mxu0 %v147
  %197 = vmatprep.subr.mxu0 0.0
  %198 = vmatpush1.msra.mxu0 %v148
  %199 = vmatprep.subr.mxu0 0.0
  %200 = vmatpush1.msra.mxu0 %v149
  %201 = vmatprep.subr.mxu0 0.0
  %202 = vmatpush1.msra.mxu0 %v150
  %203 = vmatprep.subr.mxu0 0.0
  %204 = vmatpush1.msra.mxu0 %v151
  %205 = vmatprep.subr.mxu0 0.0
  %206 = vmatpush1.msra.mxu0 %v152
  %207 = vmatprep.subr.mxu0 0.0
  %208 = vmatpush1.msra.mxu0 %v153
  %209 = vmatprep.subr.mxu0 0.0
  %210 = vmatpush1.msra.mxu0 %v154
  %211 = vmatprep.subr.mxu0 0.0
  %212 = vmatpush1.msra.mxu0 %v155
  %213 = vmatprep.subr.mxu0 0.0
  %214 = vmatpush1.msra.mxu0 %v156
  %215 = vmatprep.subr.mxu0 0.0
  %216 = vmatpush1.msra.mxu0 %v157
  %217 = vmatprep.subr.mxu0 0.0
  %218 = vmatpush1.msra.mxu0 %v158
  %219 = vmatprep.subr.mxu0 0.0
  %220 = vmatpush1.msra.mxu0 %v159
  %221 = vmatprep.subr.mxu0 0.0
  %222 = vmatpush1.msra.mxu0 %v160
  %223 = vmatprep.subr.mxu0 0.0
  %224 = vmatpush1.msra.mxu0 %v161
  %225 = vmatprep.subr.mxu0 0.0
  %226 = vmatpush1.msra.mxu0 %v162
  %227 = vmatprep.subr.mxu0 0.0
  %228 = vmatpush1.msra.mxu0 %v163
  %229 = vmatprep.subr.mxu0 0.0
  %230 = vmatpush1.msra.mxu0 %v164
  %231 = vmatprep.subr.mxu0 0.0
  %232 = vmatpush1.msra.mxu0 %v165
  %233 = vmatprep.subr.mxu0 0.0
  %234 = vmatpush1.msra.mxu0 %v166
  %235 = vmatprep.subr.mxu0 0.0
  %236 = vmatpush1.msra.mxu0 %v167
  %237 = vmatprep.subr.mxu0 0.0
  %238 = vmatpush1.msra.mxu0 %v168
  %239 = vmatprep.subr.mxu0 0.0
  %240 = vmatpush1.msra.mxu0 %v169
  %241 = vmatprep.mubr.f32.mxu0 %v137
  %242 = vmatmul.mubr.f32.gmra.mrb[0].mxu0 %v136
  %v243 = vpop.f32.mrb[0].mxu0
  %v244 = vadd.f32 %v175, %v243
  %v245 = vpop.f32.mrb[0].mxu0
  %246 = vdwg.mxu0
  %247 = vst [vmem:[%s5] sm:$0x3] %v244
  // Predicated region
  $region22: #{representation_forward.1} parent=0 // pred_check
    _
  $region23: #{representation_forward.1} parent=0 // pred_check_branch
    %249 = sbr.rel (0) target = $region25
  $region24: #{representation_forward.1} parent=0 // pred_region
    _
  $region25: #{representation_forward.1} parent=0 // pred_fallthru
    _
  // Predicated region
  $region26: #{representation_forward.1} parent=0 // pred_check
    _
  $region27: #{representation_forward.1} parent=0 // pred_check_branch
    %251 = sbr.rel (0) target = $region29
  $region28: #{representation_forward.1} parent=0 // pred_region
    _
  $region29: #{representation_forward.1} parent=0 // pred_fallthru
    _

</llo_original>
